<compile_context>
chip_gen: v5e
topology: v5e:2x2
jax: 0.10.0
libtpu: 0.0.40
codegen_flags: <defaults>
</compile_context>

<pallas_src>
import functools

import jax
import jax.numpy as jnp
import numpy as np
from jax.experimental import pallas as pl
from jax.experimental.pallas import tpu as pltpu

_LANE = 128
_MAX_LANE_TILE = 2048          # lane-axis tile cap (mem-bound sweet spot 512-2048)
_MAX_BLOCK_BYTES = 2 << 20     # per-block input budget; x2 double-buffering plus
                               # outputs stays well under v7x's 64 MiB VMEM
_UNROLL_N_MAX = 128            # unroll threshold for the sublane kernel


def _cdiv(a: int, b: int) -> int:
    return -(-a // b)


def _ceil_to(a: int, m: int) -> int:
    return _cdiv(a, m) * m


# ----------------------------------------------------------------------------
# Fast path: top-k dim on sublanes, trailing dims lane-dense.
# ----------------------------------------------------------------------------
def _make_sublane_topk_kernel(k: int, n: int, largest: bool, is_float: bool):
    """Top-k over the middle (sublane) axis of a (pre_tile, n, post_tile) block."""

    def better(a, b):
        # strict "a ranks before b" (ties keep the earlier index); NaN ranks largest.
        if largest:
            r = a > b
            if is_float:
                r = r | (jnp.isnan(a) & jnp.logical_not(jnp.isnan(b)))
        else:
            r = a < b
            if is_float:
                r = r | (jnp.isnan(b) & jnp.logical_not(jnp.isnan(a)))
        return r

    def not_taken(i, prev_idx):
        avail = prev_idx[0] != jnp.int32(i)
        for p in prev_idx[1:]:
            avail = avail & (p != jnp.int32(i))
        return avail

    def kernel(x_ref, vals_ref, idx_ref):
        shape2 = (x_ref.shape[0], x_ref.shape[2])
        prev_idx = []                               # indices already emitted (< k live)
        for kk in range(k):
            best_val = x_ref[:, 0, :]               # lane-dense (pre_tile, post_tile)
            best_idx = jnp.zeros(shape2, jnp.int32)
            if kk == 0:
                for i in range(1, n):
                    xi = x_ref[:, i, :]
                    cond = better(xi, best_val)
                    best_val = jnp.where(cond, xi, best_val)
                    best_idx = jnp.where(cond, jnp.int32(i), best_idx)
            else:
                found = not_taken(0, prev_idx)      # is slice 0 still available?
                for i in range(1, n):
                    xi = x_ref[:, i, :]
                    cond = ((better(xi, best_val) | jnp.logical_not(found))
                            & not_taken(i, prev_idx))
                    best_val = jnp.where(cond, xi, best_val)
                    best_idx = jnp.where(cond, jnp.int32(i), best_idx)
                    found = found | cond
            # one lane-dense (post_tile wide, multiple of 128) unmasked store per k
            vals_ref[:, kk, :] = best_val.astype(vals_ref.dtype)
            idx_ref[:, kk, :] = best_idx
            if kk + 1 < k:
                prev_idx.append(best_idx)

    return kernel


def _topk_sublane(x, *, k: int, dim: int, largest: bool):
    shape = x.shape
    n = shape[dim]
    pre = int(np.prod(shape[:dim]))
    post = int(np.prod(shape[dim + 1:]))
    x3 = x.reshape(pre, n, post)                    # pure reshape -- no transpose

    itemsize = jnp.dtype(x.dtype).itemsize
    post_tile = min(_MAX_LANE_TILE, _ceil_to(post, _LANE))
    pre_tile = max(1, min(pre, _MAX_BLOCK_BYTES // max(1, n * post_tile * itemsize)))
    # v7x has 2 TensorCores: keep >= 2 parallel grid steps when the lane axis can
    # be split cheaply (also helps megacore sharding on v5e/v6e).
    if _cdiv(pre, pre_tile) * _cdiv(post, post_tile) < 2 and post_tile > _LANE:
        post_tile = _ceil_to(post_tile // 2, _LANE)
    pre_pad = _ceil_to(pre, pre_tile)
    post_pad = _ceil_to(post, post_tile)
    if (pre_pad, post_pad) != (pre, post):
        x3 = jnp.pad(x3, ((0, pre_pad - pre), (0, 0), (0, post_pad - post)))

    is_float = bool(jnp.issubdtype(x.dtype, jnp.floating))
    kernel = _make_sublane_topk_kernel(k, n, largest, is_float)

    vals3, idx3 = pl.pallas_call(
        kernel,
        out_shape=(
            jax.ShapeDtypeStruct((pre_pad, k, post_pad), x.dtype),
            jax.ShapeDtypeStruct((pre_pad, k, post_pad), jnp.int32),
        ),
        grid_spec=pltpu.PrefetchScalarGridSpec(
            num_scalar_prefetch=0,
            grid=(pre_pad // pre_tile, post_pad // post_tile),
            in_specs=[pl.BlockSpec((pre_tile, n, post_tile),
                                   lambda i, j: (i, 0, j))],
            out_specs=(
                pl.BlockSpec((pre_tile, k, post_tile), lambda i, j: (i, 0, j)),
                pl.BlockSpec((pre_tile, k, post_tile), lambda i, j: (i, 0, j)),
            ),
        ),
        compiler_params=pltpu.CompilerParams(
            dimension_semantics=("parallel", "parallel"),
            vmem_limit_bytes=32 * 1024 * 1024),
    )(x3)

    out_shape = shape[:dim] + (k,) + shape[dim + 1:]
    vals = vals3[:pre, :, :post].reshape(out_shape)
    idx = idx3[:pre, :, :post].reshape(out_shape)
    return vals, idx


# ----------------------------------------------------------------------------
# Fallback: top-k dim on lanes (dim == last axis, or n too large to unroll).
# ----------------------------------------------------------------------------
def _make_lane_topk_kernel(k: int, n: int, largest: bool, dtype):
    is_float = bool(jnp.issubdtype(dtype, jnp.floating))
    if is_float:
        worst_const = -np.inf if largest else np.inf
        nan_sub = np.inf                            # NaN ranks as the largest value
    else:
        info = jnp.iinfo(dtype)
        worst_const = int(info.min) if largest else int(info.max)
        nan_sub = None

    def kernel(x_ref, vals_ref, idx_ref):
        x = x_ref[...]                              # (rows_tile, n), n on lanes
        iota = jax.lax.broadcasted_iota(jnp.int32, x.shape, 1)
        if is_float:
            key = jnp.where(jnp.isnan(x), jnp.asarray(nan_sub, x.dtype), x)
        else:
            key = x
        worst = jnp.asarray(worst_const, x.dtype)
        taken = jnp.zeros(x.shape, jnp.bool_)
        for kk in range(k):
            masked = jnp.where(taken, worst, key)
            if largest:
                m = jnp.max(masked, axis=-1, keepdims=True)
            else:
                m = jnp.min(masked, axis=-1, keepdims=True)
            # explicit taken mask => no sentinel/duplicate-index collision
            hit = (masked == m) & jnp.logical_not(taken)
            idx = jnp.min(jnp.where(hit, iota, jnp.int32(n)), axis=-1, keepdims=True)
            sel = iota == idx
            # emit the ORIGINAL value at idx (keeps NaN / +-inf exact)
            val = jnp.sum(jnp.where(sel, x, jnp.zeros_like(x)), axis=-1, keepdims=True)
            vals_ref[:, kk:kk + 1] = val.astype(vals_ref.dtype)
            idx_ref[:, kk:kk + 1] = idx
            if kk + 1 < k:
                taken = taken | sel

    return kernel


def _topk_lane(x, *, k: int, dim: int, largest: bool):
    ndim = x.ndim
    perm = tuple(i for i in range(ndim) if i != dim) + (dim,)
    inv_perm = tuple(int(p) for p in np.argsort(perm))
    xt = x if dim == ndim - 1 else jnp.transpose(x, perm)
    lead_shape = xt.shape[:-1]
    n = xt.shape[-1]
    rows = int(np.prod(lead_shape))
    x2 = xt.reshape(rows, n)

    itemsize = jnp.dtype(x.dtype).itemsize
    max_rows = max(8, ((_MAX_BLOCK_BYTES // max(1, n * itemsize)) // 8) * 8)
    tile = min(512, max_rows, _ceil_to(rows, 8))    # multiple of 8 sublanes
    rows_pad = _ceil_to(rows, tile)
    if rows_pad != rows:
        x2 = jnp.pad(x2, ((0, rows_pad - rows), (0, 0)))

    kernel = _make_lane_topk_kernel(k, n, largest, x.dtype)
    vals2, idx2 = pl.pallas_call(
        kernel,
        out_shape=(
            jax.ShapeDtypeStruct((rows_pad, k), x.dtype),
            jax.ShapeDtypeStruct((rows_pad, k), jnp.int32),
        ),
        grid_spec=pltpu.PrefetchScalarGridSpec(
            num_scalar_prefetch=0,
            grid=(rows_pad // tile,),
            in_specs=[pl.BlockSpec((tile, n), lambda i: (i, 0))],
            out_specs=(
                pl.BlockSpec((tile, k), lambda i: (i, 0)),
                pl.BlockSpec((tile, k), lambda i: (i, 0)),
            ),
        ),
        compiler_params=pltpu.CompilerParams(
            dimension_semantics=("parallel",),
            vmem_limit_bytes=32 * 1024 * 1024),
    )(x2)

    vals = vals2[:rows].reshape(lead_shape + (k,))
    idx = idx2[:rows].reshape(lead_shape + (k,))
    if dim != ndim - 1:
        vals = jnp.transpose(vals, inv_perm)
        idx = jnp.transpose(idx, inv_perm)
    return vals, idx


# ----------------------------------------------------------------------------
# Public entry point (mirrors torch.Tensor.topk(k, dim, largest))
# ----------------------------------------------------------------------------
@functools.partial(jax.jit, static_argnames=("k", "dim", "largest"))
def topk_pallas(x, *, k: int, dim: int, largest: bool = True):
    ndim = x.ndim
    dim = dim % ndim
    n = x.shape[dim]
    if not 1 <= k <= n:
        raise ValueError(f"k={k} must satisfy 1 <= k <= {n}")
    post = int(np.prod(x.shape[dim + 1:]))
    if post > 1 and n <= _UNROLL_N_MAX:
        # fast path: reshape-only layout, top-k dim on sublanes, lane-dense I/O
        return _topk_sublane(x, k=k, dim=dim, largest=largest)
    # generic fallback (dim == last axis, or very large top-k dim)
    return _topk_lane(x, k=k, dim=dim, largest=largest)


if __name__ == "__main__":
    # Module config (torch: TopkTestModule(k=2, dim=1, largest=True))
    K, DIM, LARGEST = 2, 1, True

    key = jax.random.PRNGKey(0)
    x = jax.random.normal(key, (2, 4, 16, 16), dtype=jnp.float32)

    vals, idx = topk_pallas(x, k=K, dim=DIM, largest=LARGEST)
    vals, idx = jax.block_until_ready((vals, idx))

    # reference check against plain-JAX sort along the same dim
    order = jnp.argsort(-x if LARGEST else x, axis=DIM)
    ref_idx = jax.lax.slice_in_dim(order, 0, K, axis=DIM)
    ref_vals = jnp.take_along_axis(x, ref_idx, axis=DIM)
    np.testing.assert_allclose(np.asarray(vals), np.asarray(ref_vals),
                               rtol=0, atol=0)
    # indices may differ on exact ties; verify they gather the same values
    gathered = jnp.take_along_axis(x, idx.astype(jnp.int32), axis=DIM)
    np.testing.assert_allclose(np.asarray(gathered), np.asarray(ref_vals),
                               rtol=0, atol=0)

    # also exercise the dim == last-axis fallback (largest=False)
    v2, i2 = topk_pallas(x, k=K, dim=3, largest=False)
    v2, i2 = jax.block_until_ready((v2, i2))
    order2 = jnp.argsort(x, axis=3)
    ref_idx2 = jax.lax.slice_in_dim(order2, 0, K, axis=3)
    ref_vals2 = jnp.take_along_axis(x, ref_idx2, axis=3)
    np.testing.assert_allclose(np.asarray(v2), np.asarray(ref_vals2),
                               rtol=0, atol=0)

    print("KERNEL_OK")
</pallas_src>

<mosaic_0001>
module attributes {stable_mosaic.version = 11 : i64} {
  func.func @kernel(%arg0: i32, %arg1: i32, %arg2: memref<2x4x128xf32, #tpu.memory_space<vmem>>, %arg3: memref<2x2x128xf32, #tpu.memory_space<vmem>>, %arg4: memref<2x2x128xi32, #tpu.memory_space<vmem>>) attributes {dimension_semantics = [#tpu.dimension_semantics<parallel>, #tpu.dimension_semantics<parallel>], iteration_bounds = array<i64: 1, 2>, scalar_prefetch = 0 : i64, scratch_operands = 0 : i64, tpu.core_type = #tpu.core_type<tc>, window_params = [{transform_indices = @transform_0, window_bounds = array<i64: 2, 4, 128>}, {transform_indices = @transform_1, window_bounds = array<i64: 2, 2, 128>}, {transform_indices = @transform_2, window_bounds = array<i64: 2, 2, 128>}]} {
    %c0 = arith.constant 0 : index
    %c0_0 = arith.constant 0 : index
    %c0_1 = arith.constant 0 : index
    %0 = vector.load %arg2[%c0, %c0_0, %c0_1] : memref<2x4x128xf32, #tpu.memory_space<vmem>>, vector<2x1x128xf32>
    %1 = vector.shape_cast %0 : vector<2x1x128xf32> to vector<2x128xf32>
    %c0_i32 = arith.constant 0 : i32
    %2 = vector.broadcast %c0_i32 : i32 to vector<2x128xi32>
    %c0_2 = arith.constant 0 : index
    %c1 = arith.constant 1 : index
    %c0_3 = arith.constant 0 : index
    %3 = vector.load %arg2[%c0_2, %c1, %c0_3] : memref<2x4x128xf32, #tpu.memory_space<vmem>>, vector<2x1x128xf32>
    %4 = vector.shape_cast %3 : vector<2x1x128xf32> to vector<2x128xf32>
    %5 = arith.cmpf ogt, %4, %1 : vector<2x128xf32>
    %6 = arith.cmpf one, %4, %4 : vector<2x128xf32>
    %7 = arith.cmpf one, %1, %1 : vector<2x128xf32>
    %cst = arith.constant dense<true> : vector<2x128xi1>
    %8 = arith.xori %7, %cst : vector<2x128xi1>
    %9 = arith.andi %6, %8 : vector<2x128xi1>
    %10 = arith.ori %5, %9 : vector<2x128xi1>
    %11 = arith.select %10, %4, %1 : vector<2x128xi1>, vector<2x128xf32>
    %c1_i32 = arith.constant 1 : i32
    %12 = vector.broadcast %c1_i32 : i32 to vector<2x128xi32>
    %13 = arith.select %10, %12, %2 : vector<2x128xi1>, vector<2x128xi32>
    %c0_4 = arith.constant 0 : index
    %c2 = arith.constant 2 : index
    %c0_5 = arith.constant 0 : index
    %14 = vector.load %arg2[%c0_4, %c2, %c0_5] : memref<2x4x128xf32, #tpu.memory_space<vmem>>, vector<2x1x128xf32>
    %15 = vector.shape_cast %14 : vector<2x1x128xf32> to vector<2x128xf32>
    %16 = arith.cmpf ogt, %15, %11 : vector<2x128xf32>
    %17 = arith.cmpf one, %15, %15 : vector<2x128xf32>
    %18 = arith.cmpf one, %11, %11 : vector<2x128xf32>
    %cst_6 = arith.constant dense<true> : vector<2x128xi1>
    %19 = arith.xori %18, %cst_6 : vector<2x128xi1>
    %20 = arith.andi %17, %19 : vector<2x128xi1>
    %21 = arith.ori %16, %20 : vector<2x128xi1>
    %22 = arith.select %21, %15, %11 : vector<2x128xi1>, vector<2x128xf32>
    %c2_i32 = arith.constant 2 : i32
    %23 = vector.broadcast %c2_i32 : i32 to vector<2x128xi32>
    %24 = arith.select %21, %23, %13 : vector<2x128xi1>, vector<2x128xi32>
    %c0_7 = arith.constant 0 : index
    %c3 = arith.constant 3 : index
    %c0_8 = arith.constant 0 : index
    %25 = vector.load %arg2[%c0_7, %c3, %c0_8] : memref<2x4x128xf32, #tpu.memory_space<vmem>>, vector<2x1x128xf32>
    %26 = vector.shape_cast %25 : vector<2x1x128xf32> to vector<2x128xf32>
    %27 = arith.cmpf ogt, %26, %22 : vector<2x128xf32>
    %28 = arith.cmpf one, %26, %26 : vector<2x128xf32>
    %29 = arith.cmpf one, %22, %22 : vector<2x128xf32>
    %cst_9 = arith.constant dense<true> : vector<2x128xi1>
    %30 = arith.xori %29, %cst_9 : vector<2x128xi1>
    %31 = arith.andi %28, %30 : vector<2x128xi1>
    %32 = arith.ori %27, %31 : vector<2x128xi1>
    %33 = arith.select %32, %26, %22 : vector<2x128xi1>, vector<2x128xf32>
    %c3_i32 = arith.constant 3 : i32
    %34 = vector.broadcast %c3_i32 : i32 to vector<2x128xi32>
    %35 = arith.select %32, %34, %24 : vector<2x128xi1>, vector<2x128xi32>
    %c0_10 = arith.constant 0 : index
    %c0_11 = arith.constant 0 : index
    %c0_12 = arith.constant 0 : index
    %36 = vector.load %arg3[%c0_10, %c0_11, %c0_12] : memref<2x2x128xf32, #tpu.memory_space<vmem>>, vector<2x1x128xf32>
    %37 = vector.shape_cast %36 : vector<2x1x128xf32> to vector<2x128xf32>
    %38 = vector.shape_cast %33 : vector<2x128xf32> to vector<2x1x128xf32>
    tpu.vector_store %arg3[%c0_10, %c0_11, %c0_12], %38 {strides = array<i32>} : memref<2x2x128xf32, #tpu.memory_space<vmem>>, vector<2x1x128xf32>,
    %c0_13 = arith.constant 0 : index
    %c0_14 = arith.constant 0 : index
    %c0_15 = arith.constant 0 : index
    %39 = vector.load %arg4[%c0_13, %c0_14, %c0_15] : memref<2x2x128xi32, #tpu.memory_space<vmem>>, vector<2x1x128xi32>
    %40 = vector.shape_cast %39 : vector<2x1x128xi32> to vector<2x128xi32>
    %41 = vector.shape_cast %35 : vector<2x128xi32> to vector<2x1x128xi32>
    tpu.vector_store %arg4[%c0_13, %c0_14, %c0_15], %41 {strides = array<i32>} : memref<2x2x128xi32, #tpu.memory_space<vmem>>, vector<2x1x128xi32>,
    %c0_16 = arith.constant 0 : index
    %c0_17 = arith.constant 0 : index
    %c0_18 = arith.constant 0 : index
    %42 = vector.load %arg2[%c0_16, %c0_17, %c0_18] : memref<2x4x128xf32, #tpu.memory_space<vmem>>, vector<2x1x128xf32>
    %43 = vector.shape_cast %42 : vector<2x1x128xf32> to vector<2x128xf32>
    %c0_i32_19 = arith.constant 0 : i32
    %44 = vector.broadcast %c0_i32_19 : i32 to vector<2x128xi32>
    %c0_i32_20 = arith.constant 0 : i32
    %45 = vector.broadcast %c0_i32_20 : i32 to vector<2x128xi32>
    %46 = arith.cmpi ne, %35, %45 : vector<2x128xi32>
    %c0_21 = arith.constant 0 : index
    %c1_22 = arith.constant 1 : index
    %c0_23 = arith.constant 0 : index
    %47 = vector.load %arg2[%c0_21, %c1_22, %c0_23] : memref<2x4x128xf32, #tpu.memory_space<vmem>>, vector<2x1x128xf32>
    %48 = vector.shape_cast %47 : vector<2x1x128xf32> to vector<2x128xf32>
    %49 = arith.cmpf ogt, %48, %43 : vector<2x128xf32>
    %50 = arith.cmpf one, %48, %48 : vector<2x128xf32>
    %51 = arith.cmpf one, %43, %43 : vector<2x128xf32>
    %cst_24 = arith.constant dense<true> : vector<2x128xi1>
    %52 = arith.xori %51, %cst_24 : vector<2x128xi1>
    %53 = arith.andi %50, %52 : vector<2x128xi1>
    %54 = arith.ori %49, %53 : vector<2x128xi1>
    %cst_25 = arith.constant dense<true> : vector<2x128xi1>
    %55 = arith.xori %46, %cst_25 : vector<2x128xi1>
    %56 = arith.ori %54, %55 : vector<2x128xi1>
    %c1_i32_26 = arith.constant 1 : i32
    %57 = vector.broadcast %c1_i32_26 : i32 to vector<2x128xi32>
    %58 = arith.cmpi ne, %35, %57 : vector<2x128xi32>
    %59 = arith.andi %56, %58 : vector<2x128xi1>
    %60 = arith.select %59, %48, %43 : vector<2x128xi1>, vector<2x128xf32>
    %c1_i32_27 = arith.constant 1 : i32
    %61 = vector.broadcast %c1_i32_27 : i32 to vector<2x128xi32>
    %62 = arith.select %59, %61, %44 : vector<2x128xi1>, vector<2x128xi32>
    %63 = arith.ori %46, %59 : vector<2x128xi1>
    %c0_28 = arith.constant 0 : index
    %c2_29 = arith.constant 2 : index
    %c0_30 = arith.constant 0 : index
    %64 = vector.load %arg2[%c0_28, %c2_29, %c0_30] : memref<2x4x128xf32, #tpu.memory_space<vmem>>, vector<2x1x128xf32>
    %65 = vector.shape_cast %64 : vector<2x1x128xf32> to vector<2x128xf32>
    %66 = arith.cmpf ogt, %65, %60 : vector<2x128xf32>
    %67 = arith.cmpf one, %65, %65 : vector<2x128xf32>
    %68 = arith.cmpf one, %60, %60 : vector<2x128xf32>
    %cst_31 = arith.constant dense<true> : vector<2x128xi1>
    %69 = arith.xori %68, %cst_31 : vector<2x128xi1>
    %70 = arith.andi %67, %69 : vector<2x128xi1>
    %71 = arith.ori %66, %70 : vector<2x128xi1>
    %cst_32 = arith.constant dense<true> : vector<2x128xi1>
    %72 = arith.xori %63, %cst_32 : vector<2x128xi1>
    %73 = arith.ori %71, %72 : vector<2x128xi1>
    %c2_i32_33 = arith.constant 2 : i32
    %74 = vector.broadcast %c2_i32_33 : i32 to vector<2x128xi32>
    %75 = arith.cmpi ne, %35, %74 : vector<2x128xi32>
    %76 = arith.andi %73, %75 : vector<2x128xi1>
    %77 = arith.select %76, %65, %60 : vector<2x128xi1>, vector<2x128xf32>
    %c2_i32_34 = arith.constant 2 : i32
    %78 = vector.broadcast %c2_i32_34 : i32 to vector<2x128xi32>
    %79 = arith.select %76, %78, %62 : vector<2x128xi1>, vector<2x128xi32>
    %80 = arith.ori %63, %76 : vector<2x128xi1>
    %c0_35 = arith.constant 0 : index
    %c3_36 = arith.constant 3 : index
    %c0_37 = arith.constant 0 : index
    %81 = vector.load %arg2[%c0_35, %c3_36, %c0_37] : memref<2x4x128xf32, #tpu.memory_space<vmem>>, vector<2x1x128xf32>
    %82 = vector.shape_cast %81 : vector<2x1x128xf32> to vector<2x128xf32>
    %83 = arith.cmpf ogt, %82, %77 : vector<2x128xf32>
    %84 = arith.cmpf one, %82, %82 : vector<2x128xf32>
    %85 = arith.cmpf one, %77, %77 : vector<2x128xf32>
    %cst_38 = arith.constant dense<true> : vector<2x128xi1>
    %86 = arith.xori %85, %cst_38 : vector<2x128xi1>
    %87 = arith.andi %84, %86 : vector<2x128xi1>
    %88 = arith.ori %83, %87 : vector<2x128xi1>
    %cst_39 = arith.constant dense<true> : vector<2x128xi1>
    %89 = arith.xori %80, %cst_39 : vector<2x128xi1>
    %90 = arith.ori %88, %89 : vector<2x128xi1>
    %c3_i32_40 = arith.constant 3 : i32
    %91 = vector.broadcast %c3_i32_40 : i32 to vector<2x128xi32>
    %92 = arith.cmpi ne, %35, %91 : vector<2x128xi32>
    %93 = arith.andi %90, %92 : vector<2x128xi1>
    %94 = arith.select %93, %82, %77 : vector<2x128xi1>, vector<2x128xf32>
    %c3_i32_41 = arith.constant 3 : i32
    %95 = vector.broadcast %c3_i32_41 : i32 to vector<2x128xi32>
    %96 = arith.select %93, %95, %79 : vector<2x128xi1>, vector<2x128xi32>
    %c0_42 = arith.constant 0 : index
    %c1_43 = arith.constant 1 : index
    %c0_44 = arith.constant 0 : index
    %97 = vector.load %arg3[%c0_42, %c1_43, %c0_44] : memref<2x2x128xf32, #tpu.memory_space<vmem>>, vector<2x1x128xf32>
    %98 = vector.shape_cast %97 : vector<2x1x128xf32> to vector<2x128xf32>
    %99 = vector.shape_cast %94 : vector<2x128xf32> to vector<2x1x128xf32>
    tpu.vector_store %arg3[%c0_42, %c1_43, %c0_44], %99 {strides = array<i32>} : memref<2x2x128xf32, #tpu.memory_space<vmem>>, vector<2x1x128xf32>,
    %c0_45 = arith.constant 0 : index
    %c1_46 = arith.constant 1 : index
    %c0_47 = arith.constant 0 : index
    %100 = vector.load %arg4[%c0_45, %c1_46, %c0_47] : memref<2x2x128xi32, #tpu.memory_space<vmem>>, vector<2x1x128xi32>
    %101 = vector.shape_cast %100 : vector<2x1x128xi32> to vector<2x128xi32>
    %102 = vector.shape_cast %96 : vector<2x128xi32> to vector<2x1x128xi32>
    tpu.vector_store %arg4[%c0_45, %c1_46, %c0_47], %102 {strides = array<i32>} : memref<2x2x128xi32, #tpu.memory_space<vmem>>, vector<2x1x128xi32>,
    return
  }
  func.func @transform_0(%arg0: i32, %arg1: i32) -> (i32, i32, i32) {
    %c0_i32 = arith.constant 0 : i32
    %c0_i32_0 = arith.constant 0 : i32
    return %arg0, %c0_i32, %arg1 : i32, i32, i32
  }
  func.func @transform_1(%arg0: i32, %arg1: i32) -> (i32, i32, i32) {
    %c0_i32 = arith.constant 0 : i32
    %c0_i32_0 = arith.constant 0 : i32
    return %arg0, %c0_i32, %arg1 : i32, i32, i32
  }
  func.func @transform_2(%arg0: i32, %arg1: i32) -> (i32, i32, i32) {
    %c0_i32 = arith.constant 0 : i32
    %c0_i32_0 = arith.constant 0 : i32
    return %arg0, %c0_i32, %arg1 : i32, i32, i32
  }
}

</mosaic_0001>

<llo_original>
// kernel: topk_pallas.1
$region0: #{topk_pallas.1}
  #allocation0 [shape = 'u32[]', space=smem, size = 0x4, offset = 0x4, fixed_abs, tag = 'smem constant byte address 0x4 - core index']
  #allocation1 [shape = 'u32[72,128]{1,0:T(1,128)}', space=vmem, size = 0x9000, scoped, tag = 'internal scratch']
  %s0 = inlined_call_operand.vmem [shape: f32[2,4,256], index: 0, kind: input, shape index: {}]
  %s1 = inlined_call_operand.vmem [shape: f32[2,2,256], index: 1, kind: output, shape index: {0}]
  %s2 = inlined_call_operand.vmem [shape: s32[2,2,256], index: 2, kind: output, shape index: {1}]
  %3 = xla_tuple %s1, %s2
  %s4 = sld [smem:[#allocation0]]
  $region146: #{topk_pallas.1} parent=0
    _
  %s6 = ssub.s32 1, %s4
  %s7 = scalar_select 0, %s6, %s4
  $region1: #{topk_pallas.1} parent=0
    #allocation2 [shape = 'u8[8192]{0}', space=vmem, size = 0x2000, scoped, tag = 'input window, operand 0']
    #allocation3 [shape = 'u8[4096]{0}', space=vmem, size = 0x1000, scoped, tag = 'output window, operand 0']
    #allocation4 [shape = 'u8[4096]{0}', space=vmem, size = 0x1000, scoped, tag = 'output window, operand 1']
    loop: start=0, step=1, limit=4
    $region2: #{topk_pallas.1} parent=1 // loop_pre_header
      _
    $region3: #{topk_pallas.1} parent=1 // loop_header
      %s9 = sphi 0, %s13
      %p10 = scmp.ge.s32.totalorder %s9, 4
      %s16 = sphi 0, %s28
      %s17 = sphi 0, %s24
      %s18 = sphi 0, %s16
      %s19 = sphi 0, %s17
      %s20 = sphi 0, %s18
      %s21 = sphi 0, %s19
      %s33 = sphi 0, %s35
      %s36 = sphi 0, %s33
      %s37 = sphi 0, %s36
      %s53 = sphi 0, %s37
      %s61 = sphi 0, %s63
      %s64 = sphi 0, %s61
      %s65 = sphi 0, %s64
      %s81 = sphi 0, %s65
      %s89 = sphi 0, %s91
      %s92 = sphi 0, %s89
      %s93 = sphi 0, %s92
      %s109 = sphi 0, %s93
    $region4: #{topk_pallas.1} parent=1 // loop_header_branch
      %12 = sbr.rel (%p10) target = $region8
    $region5: #{topk_pallas.1} parent=1 // loop_body
      %s14 = ssub.s32 %s9, 1
      %s15 = ssub.s32 %s9, 2
      %s22 = sadd.s32 1, %s17
      %p23 = scmp.ge.s32.totalorder %s22, 2
      %s24 = scalar_select %p23, 0, %s22
      %s25 = sadd.s32 1, %s16
      %s26 = scalar_select %p23, %s25, %s16
      %p27 = scmp.ge.s32.totalorder %s26, 1
      %s28 = scalar_select %p27, 0, %s26
      %s29 = ssub.s32 %s16, %s28
      %s30 = ssub.s32 %s17, %s24
      %s31 = sor.u32 %s29, %s30
      %p32 = scmp.eq.s32.totalorder %s31, 0
      %s34 = sadd.s32 %s33, 1
      %s35 = scalar_select %p32, %s33, %s34
      %p38 = pneg %p32
      %p39 = scmp.eq.s32.totalorder %s9, 1
      %p40 = por %p38, %p39
      %p41 = scmp.ne.s32.totalorder %s33, %s36
      %p42 = scmp.eq.s32.totalorder %s9, 0
      %p43 = por %p41, %p42
      %p44 = scmp.ne.s32.totalorder %s33, %s36
      %p45 = scmp.eq.s32.totalorder %s14, 1
      %p46 = por %p44, %p45
      %p47 = scmp.ne.s32.totalorder %s36, %s37
      %p48 = scmp.eq.s32.totalorder %s14, 0
      %p49 = por %p47, %p48
      %p50 = scmp.ne.s32.totalorder %s36, %s37
      %p51 = scmp.eq.s32.totalorder %s15, 1
      %p52 = por %p50, %p51
      %p54 = scmp.ne.s32.totalorder %s37, %s53
      %p55 = scmp.eq.s32.totalorder %s15, 0
      %p56 = por %p54, %p55
      %s57 = ssub.s32 %s16, %s28
      %s58 = ssub.s32 %s17, %s24
      %s59 = sor.u32 %s57, %s58
      %p60 = scmp.eq.s32.totalorder %s59, 0
      %s62 = sadd.s32 %s61, 1
      %s63 = scalar_select %p60, %s61, %s62
      %p66 = pneg %p60
      %p67 = scmp.eq.s32.totalorder %s9, 1
      %p68 = por %p66, %p67
      %p69 = scmp.ne.s32.totalorder %s61, %s64
      %p70 = scmp.eq.s32.totalorder %s9, 0
      %p71 = por %p69, %p70
      %p72 = scmp.ne.s32.totalorder %s61, %s64
      %p73 = scmp.eq.s32.totalorder %s14, 1
      %p74 = por %p72, %p73
      %p75 = scmp.ne.s32.totalorder %s64, %s65
      %p76 = scmp.eq.s32.totalorder %s14, 0
      %p77 = por %p75, %p76
      %p78 = scmp.ne.s32.totalorder %s64, %s65
      %p79 = scmp.eq.s32.totalorder %s15, 1
      %p80 = por %p78, %p79
      %p82 = scmp.ne.s32.totalorder %s65, %s81
      %p83 = scmp.eq.s32.totalorder %s15, 0
      %p84 = por %p82, %p83
      %s85 = ssub.s32 %s16, %s28
      %s86 = ssub.s32 %s17, %s24
      %s87 = sor.u32 %s85, %s86
      %p88 = scmp.eq.s32.totalorder %s87, 0
      %s90 = sadd.s32 %s89, 1
      %s91 = scalar_select %p88, %s89, %s90
      %p94 = pneg %p88
      %p95 = scmp.eq.s32.totalorder %s9, 1
      %p96 = por %p94, %p95
      %p97 = scmp.ne.s32.totalorder %s89, %s92
      %p98 = scmp.eq.s32.totalorder %s9, 0
      %p99 = por %p97, %p98
      %p100 = scmp.ne.s32.totalorder %s89, %s92
      %p101 = scmp.eq.s32.totalorder %s14, 1
      %p102 = por %p100, %p101
      %p103 = scmp.ne.s32.totalorder %s92, %s93
      %p104 = scmp.eq.s32.totalorder %s14, 0
      %p105 = por %p103, %p104
      %p106 = scmp.ne.s32.totalorder %s92, %s93
      %p107 = scmp.eq.s32.totalorder %s15, 1
      %p108 = por %p106, %p107
      %p110 = scmp.ne.s32.totalorder %s93, %s109
      %p111 = scmp.eq.s32.totalorder %s15, 0
      %p112 = por %p110, %p111
      %p113 = scmp.le.s32.totalorder 1, %s9
      %p114 = scmp.lt.s32.totalorder %s9, 3
      %p115 = pnand %p113, %p114
      %p116 = pneg %p115
      // Predicated region
      $region9: #{topk_pallas.1} parent=5 // pred_check
        _
      $region10: #{topk_pallas.1} parent=5 // pred_check_branch
        %118 = sbr.rel (%p115) target = $region12
      $region11: #{topk_pallas.1} parent=5 // pred_region
        %s119 = ssub.s32 %s9, 1
      $region12: #{topk_pallas.1} parent=5 // pred_fallthru
        _
      %p120 = scmp.lt.s32.totalorder %s9, 2
      // Predicated region
      $region13: #{topk_pallas.1} parent=5 // pred_check
        %p121 = pneg %p120
      $region14: #{topk_pallas.1} parent=5 // pred_check_branch
        %123 = sbr.rel (%p121) target = $region16
      $region15: #{topk_pallas.1} parent=5 // pred_region
        // Predicated region
        $region17: #{topk_pallas.1} parent=15 // pred_check
          %p124 = pneg %p43
        $region18: #{topk_pallas.1} parent=15 // pred_check_branch
          %126 = sbr.rel (%p124) target = $region20
        $region19: #{topk_pallas.1} parent=15 // pred_region
          %s127 = sand.u32 %s33, 1
          %s128 = sand.u32 %s33, 1
          %s129 = smul.addr %s128, 8
          %s130 = scalar_lea.vmem [#allocation2], %s129
          %s131 = smul.u32 2, %s16
          %s132 = smul.addr %s131, 2
          %s133 = sadd.s32 %s17, %s132
          %s134 = smul.addr %s133, 4
          %s135 = scalar_lea.vmem %s0, %s134
          // Predicated region
          $region21: #{topk_pallas.1} parent=19 // pred_check
            _
          $region22: #{topk_pallas.1} parent=19 // pred_check_branch
            %137 = sbr.rel (0) target = $region24
          $region23: #{topk_pallas.1} parent=19 // pred_region
            // Predicated region
            $region25: #{topk_pallas.1} parent=23 // pred_check
              _
            $region26: #{topk_pallas.1} parent=23 // pred_check_branch
              %139 = sbr.rel target = $region28
            $region27: #{topk_pallas.1} parent=23 // pred_region
              // Predicated region
              $region40: #{topk_pallas.1} parent=27 // pred_check
                _
              $region41: #{topk_pallas.1} parent=27 // pred_check_branch
                %157 = sbr.rel (0) target = $region43
              $region42: #{topk_pallas.1} parent=27 // pred_region
                loop: start=0, step=1, limit=1
                $region44: #{topk_pallas.1} parent=42 // loop_pre_header
                  _
                $region45: #{topk_pallas.1} parent=42 // loop_header
                  %s159 = sphi 0, %s163
                  %p160 = scmp.ge.s32.totalorder %s159, 1
                  %s164 = sphi %s135, %s135
                  %s165 = sphi %s130, %s130
                $region46: #{topk_pallas.1} parent=42 // loop_header_branch
                  %162 = sbr.rel (%p160) target = $region50
                $region47: #{topk_pallas.1} parent=42 // loop_body
                  _
                $region48: #{topk_pallas.1} parent=42 // loop_footer
                  %s163 = sadd.s32 1, %s159
                $region49: #{topk_pallas.1} parent=42 // loop_footer_branch
                  %158 = sbr.rel target = $region45
                $region50: #{topk_pallas.1} parent=42 // loop_exit
                  _
                %s167 = ssub.s32 16, 1
                loop: start=0, step=1, limit=1
                $region51: #{topk_pallas.1} parent=42 // loop_pre_header
                  _
                $region52: #{topk_pallas.1} parent=42 // loop_header
                  %s169 = sphi 0, %s173
                  %p170 = scmp.ge.s32.totalorder %s169, 1
                  %s174 = sphi %s135, %s135
                  %s175 = sphi %s130, %s130
                $region53: #{topk_pallas.1} parent=42 // loop_header_branch
                  %172 = sbr.rel (%p170) target = $region57
                $region54: #{topk_pallas.1} parent=42 // loop_body
                  %v176 = vld [vmem:[%s174] sm:%s167]
                  %177 = vst [vmem:[%s175] sm:%s167] %v176
                  %v178 = vld [vmem:[%s174 + $0x8] sm:%s167]
                  %179 = vst [vmem:[%s175 + $0x4] sm:%s167] %v178
                $region55: #{topk_pallas.1} parent=42 // loop_footer
                  %s173 = sadd.s32 1, %s169
                $region56: #{topk_pallas.1} parent=42 // loop_footer_branch
                  %168 = sbr.rel target = $region52
                $region57: #{topk_pallas.1} parent=42 // loop_exit
                  _
              $region43: #{topk_pallas.1} parent=27 // pred_fallthru
                _
            $region28: #{topk_pallas.1} parent=23 // pred_fallthru
              _
            // Predicated region
            $region29: #{topk_pallas.1} parent=23 // pred_check
              _
            $region30: #{topk_pallas.1} parent=23 // pred_check_branch
              %141 = sbr.rel (0) target = $region32
            $region31: #{topk_pallas.1} parent=23 // pred_region
              %s143 = ssub.s32 16, 1
              loop: start=0, step=1, limit=1
              $region33: #{topk_pallas.1} parent=31 // loop_pre_header
                _
              $region34: #{topk_pallas.1} parent=31 // loop_header
                %s145 = sphi 0, %s149
                %p146 = scmp.ge.s32.totalorder %s145, 1
                %s150 = sphi %s135, %s135
                %s151 = sphi %s130, %s130
              $region35: #{topk_pallas.1} parent=31 // loop_header_branch
                %148 = sbr.rel (%p146) target = $region39
              $region36: #{topk_pallas.1} parent=31 // loop_body
                %v152 = vld [vmem:[%s150] sm:%s143]
                %153 = vst [vmem:[%s151] sm:%s143] %v152
                %v154 = vld [vmem:[%s150 + $0x8] sm:%s143]
                %155 = vst [vmem:[%s151 + $0x4] sm:%s143] %v154
              $region37: #{topk_pallas.1} parent=31 // loop_footer
                %s149 = sadd.s32 1, %s145
              $region38: #{topk_pallas.1} parent=31 // loop_footer_branch
                %144 = sbr.rel target = $region34
              $region39: #{topk_pallas.1} parent=31 // loop_exit
                _
            $region32: #{topk_pallas.1} parent=23 // pred_fallthru
              _
          $region24: #{topk_pallas.1} parent=19 // pred_fallthru
            _
          %180 = vnop
        $region20: #{topk_pallas.1} parent=15 // pred_fallthru
          _
      $region16: #{topk_pallas.1} parent=5 // pred_fallthru
        _
      %p181 = scmp.le.s32.totalorder 1, %s9
      %p182 = scmp.lt.s32.totalorder %s9, 3
      %p183 = pnand %p181, %p182
      %p184 = pneg %p183
      // Predicated region
      $region58: #{topk_pallas.1} parent=5 // pred_check
        _
      $region59: #{topk_pallas.1} parent=5 // pred_check_branch
        %186 = sbr.rel (%p183) target = $region61
      $region60: #{topk_pallas.1} parent=5 // pred_region
        %s187 = ssub.s32 %s9, 1
        %s188 = sand.u32 %s36, 1
        %s189 = sand.u32 %s36, 1
        %s190 = smul.addr %s189, 8
        %s191 = scalar_lea.vmem [#allocation2], %s190
        // Predicated region
        $region62: #{topk_pallas.1} parent=60 // pred_check
          %p192 = pneg %p49
        $region63: #{topk_pallas.1} parent=60 // pred_check_branch
          %194 = sbr.rel (%p192) target = $region65
        $region64: #{topk_pallas.1} parent=60 // pred_region
          _
        $region65: #{topk_pallas.1} parent=60 // pred_fallthru
          _
        %s195 = sand.u32 %s36, 1
        %s196 = sand.u32 %s36, 1
        %s197 = smul.addr %s196, 8
        %s198 = scalar_lea.vmem [#allocation2], %s197
        %p199 = pneg %p49
        %p200 = pneg %p46
        %p201 = pneg %p77
        %p202 = pneg %p74
        %s203 = sand.u32 %s64, 1
        %s204 = sand.u32 %s64, 1
        %s205 = smul.addr %s204, 4
        %s206 = scalar_lea.vmem [#allocation3], %s205
        %p207 = pneg %p105
        %p208 = pneg %p102
        %s209 = sand.u32 %s92, 1
        %s210 = sand.u32 %s92, 1
        %s211 = smul.addr %s210, 4
        %s212 = scalar_lea.vmem [#allocation4], %s211
        %s213 = smul.u32 2, %s18
        %s214 = smul.u32 2, %s18
        %s215 = smul.u32 2, %s18
        %v216 = vld [vmem:[%s191] sm:$0x1]
        %v217 = vld [vmem:[%s191 + $0x4] sm:$0x1]
        %v218 = vld [vmem:[%s191 + $0x1] sm:$0x1]
        %v219 = vld [vmem:[%s191 + $0x5] sm:$0x1]
        %vm220 = vcmp.gt.f32.partialorder %v218, %v216
        %vm221 = vcmp.gt.f32.partialorder %v219, %v217
        %vm222 = vcmp.ne.f32.partialorder %v218, %v218
        %vm223 = vcmp.ne.f32.partialorder %v219, %v219
        %vm224 = vcmp.ne.f32.partialorder %v216, %v216
        %vm225 = vcmp.ne.f32.partialorder %v217, %v217
        %vm226 = vmxor %vm224, 1
        %vm227 = vmxor %vm225, 1
        %vm228 = vmand %vm222, %vm226
        %vm229 = vmand %vm223, %vm227
        %vm230 = vmor %vm220, %vm228
        %vm231 = vmor %vm221, %vm229
        %v232 = vsel %vm230, %v218, %v216
        %v233 = vsel %vm231, %v219, %v217
        %v234 = vsel %vm230, 1, 0
        %v235 = vsel %vm231, 1, 0
        %v236 = vld [vmem:[%s191 + $0x2] sm:$0x1]
        %v237 = vld [vmem:[%s191 + $0x6] sm:$0x1]
        %vm238 = vcmp.gt.f32.partialorder %v236, %v232
        %vm239 = vcmp.gt.f32.partialorder %v237, %v233
        %vm240 = vcmp.ne.f32.partialorder %v236, %v236
        %vm241 = vcmp.ne.f32.partialorder %v237, %v237
        %vm242 = vcmp.ne.f32.partialorder %v232, %v232
        %vm243 = vcmp.ne.f32.partialorder %v233, %v233
        %vm244 = vmxor %vm242, 1
        %vm245 = vmxor %vm243, 1
        %vm246 = vmand %vm240, %vm244
        %vm247 = vmand %vm241, %vm245
        %vm248 = vmor %vm238, %vm246
        %vm249 = vmor %vm239, %vm247
        %v250 = vsel %vm248, %v236, %v232
        %v251 = vsel %vm249, %v237, %v233
        %v252 = vsel %vm248, 2, %v234
        %v253 = vsel %vm249, 2, %v235
        %v254 = vld [vmem:[%s191 + $0x3] sm:$0x1]
        %v255 = vld [vmem:[%s191 + $0x7] sm:$0x1]
        %vm256 = vcmp.gt.f32.partialorder %v254, %v250
        %vm257 = vcmp.gt.f32.partialorder %v255, %v251
        %vm258 = vcmp.ne.f32.partialorder %v254, %v254
        %vm259 = vcmp.ne.f32.partialorder %v255, %v255
        %vm260 = vcmp.ne.f32.partialorder %v250, %v250
        %vm261 = vcmp.ne.f32.partialorder %v251, %v251
        %vm262 = vmxor %vm260, 1
        %vm263 = vmxor %vm261, 1
        %vm264 = vmand %vm258, %vm262
        %vm265 = vmand %vm259, %vm263
        %vm266 = vmor %vm256, %vm264
        %vm267 = vmor %vm257, %vm265
        %v268 = vsel %vm266, %v254, %v250
        %v269 = vsel %vm267, %v255, %v251
        %v270 = vsel %vm266, 3, %v252
        %v271 = vsel %vm267, 3, %v253
        %272 = vst [vmem:[%s206] sm:$0x1] %v268
        %273 = vst [vmem:[%s206 + $0x2] sm:$0x1] %v269
        %274 = vst [vmem:[%s212] sm:$0x1] %v270
        %275 = vst [vmem:[%s212 + $0x2] sm:$0x1] %v271
        %v276 = vld [vmem:[%s191] sm:$0x1]
        %v277 = vld [vmem:[%s191 + $0x4] sm:$0x1]
        %vm278 = vcmp.ne.s32.totalorder %v270, 0
        %vm279 = vcmp.ne.s32.totalorder %v271, 0
        %v280 = vld [vmem:[%s191 + $0x1] sm:$0x1]
        %v281 = vld [vmem:[%s191 + $0x5] sm:$0x1]
        %vm282 = vcmp.gt.f32.partialorder %v280, %v276
        %vm283 = vcmp.gt.f32.partialorder %v281, %v277
        %vm284 = vcmp.ne.f32.partialorder %v280, %v280
        %vm285 = vcmp.ne.f32.partialorder %v281, %v281
        %vm286 = vcmp.ne.f32.partialorder %v276, %v276
        %vm287 = vcmp.ne.f32.partialorder %v277, %v277
        %vm288 = vmxor %vm286, 1
        %vm289 = vmxor %vm287, 1
        %vm290 = vmand %vm284, %vm288
        %vm291 = vmand %vm285, %vm289
        %vm292 = vmor %vm282, %vm290
        %vm293 = vmor %vm283, %vm291
        %vm294 = vmxor %vm278, 1
        %vm295 = vmxor %vm279, 1
        %vm296 = vmor %vm292, %vm294
        %vm297 = vmor %vm293, %vm295
        %vm298 = vcmp.ne.s32.totalorder %v270, 1
        %vm299 = vcmp.ne.s32.totalorder %v271, 1
        %vm300 = vmand %vm296, %vm298
        %vm301 = vmand %vm297, %vm299
        %v302 = vsel %vm300, %v280, %v276
        %v303 = vsel %vm301, %v281, %v277
        %v304 = vsel %vm300, 1, 0
        %v305 = vsel %vm301, 1, 0
        %vm306 = vmor %vm278, %vm300
        %vm307 = vmor %vm279, %vm301
        %v308 = vld [vmem:[%s191 + $0x2] sm:$0x1]
        %v309 = vld [vmem:[%s191 + $0x6] sm:$0x1]
        %vm310 = vcmp.gt.f32.partialorder %v308, %v302
        %vm311 = vcmp.gt.f32.partialorder %v309, %v303
        %vm312 = vcmp.ne.f32.partialorder %v308, %v308
        %vm313 = vcmp.ne.f32.partialorder %v309, %v309
        %vm314 = vcmp.ne.f32.partialorder %v302, %v302
        %vm315 = vcmp.ne.f32.partialorder %v303, %v303
        %vm316 = vmxor %vm314, 1
        %vm317 = vmxor %vm315, 1
        %vm318 = vmand %vm312, %vm316
        %vm319 = vmand %vm313, %vm317
        %vm320 = vmor %vm310, %vm318
        %vm321 = vmor %vm311, %vm319
        %vm322 = vmxor %vm306, 1
        %vm323 = vmxor %vm307, 1
        %vm324 = vmor %vm320, %vm322
        %vm325 = vmor %vm321, %vm323
        %vm326 = vcmp.ne.s32.totalorder %v270, 2
        %vm327 = vcmp.ne.s32.totalorder %v271, 2
        %vm328 = vmand %vm324, %vm326
        %vm329 = vmand %vm325, %vm327
        %v330 = vsel %vm328, %v308, %v302
        %v331 = vsel %vm329, %v309, %v303
        %v332 = vsel %vm328, 2, %v304
        %v333 = vsel %vm329, 2, %v305
        %vm334 = vmor %vm306, %vm328
        %vm335 = vmor %vm307, %vm329
        %v336 = vld [vmem:[%s191 + $0x3] sm:$0x1]
        %v337 = vld [vmem:[%s191 + $0x7] sm:$0x1]
        %vm338 = vcmp.gt.f32.partialorder %v336, %v330
        %vm339 = vcmp.gt.f32.partialorder %v337, %v331
        %vm340 = vcmp.ne.f32.partialorder %v336, %v336
        %vm341 = vcmp.ne.f32.partialorder %v337, %v337
        %vm342 = vcmp.ne.f32.partialorder %v330, %v330
        %vm343 = vcmp.ne.f32.partialorder %v331, %v331
        %vm344 = vmxor %vm342, 1
        %vm345 = vmxor %vm343, 1
        %vm346 = vmand %vm340, %vm344
        %vm347 = vmand %vm341, %vm345
        %vm348 = vmor %vm338, %vm346
        %vm349 = vmor %vm339, %vm347
        %vm350 = vmxor %vm334, 1
        %vm351 = vmxor %vm335, 1
        %vm352 = vmor %vm348, %vm350
        %vm353 = vmor %vm349, %vm351
        %vm354 = vcmp.ne.s32.totalorder %v270, 3
        %vm355 = vcmp.ne.s32.totalorder %v271, 3
        %vm356 = vmand %vm352, %vm354
        %vm357 = vmand %vm353, %vm355
        %v358 = vsel %vm356, %v336, %v330
        %v359 = vsel %vm357, %v337, %v331
        %v360 = vsel %vm356, 3, %v332
        %v361 = vsel %vm357, 3, %v333
        %362 = vst [vmem:[%s206 + $0x1] sm:$0x1] %v358
        %363 = vst [vmem:[%s206 + $0x3] sm:$0x1] %v359
        %364 = vst [vmem:[%s212 + $0x1] sm:$0x1] %v360
        %365 = vst [vmem:[%s212 + $0x3] sm:$0x1] %v361
        %s366 = sand.u32 %s64, 1
        %s367 = sand.u32 %s64, 1
        %s368 = smul.addr %s367, 4
        %s369 = scalar_lea.vmem [#allocation3], %s368
        %s370 = sand.u32 %s92, 1
        %s371 = sand.u32 %s92, 1
        %s372 = smul.addr %s371, 4
        %s373 = scalar_lea.vmem [#allocation4], %s372
        // Predicated region
        $region66: #{topk_pallas.1} parent=60 // pred_check
          %p374 = pneg %p74
        $region67: #{topk_pallas.1} parent=60 // pred_check_branch
          %376 = sbr.rel (%p374) target = $region69
        $region68: #{topk_pallas.1} parent=60 // pred_region
          %s377 = smul.u32 2, %s18
          %s378 = smul.addr %s377, 2
          %s379 = sadd.s32 %s19, %s378
          %s380 = smul.addr %s379, 2
          %s381 = scalar_lea.vmem %s1, %s380
          // Predicated region
          $region70: #{topk_pallas.1} parent=68 // pred_check
            _
          $region71: #{topk_pallas.1} parent=68 // pred_check_branch
            %383 = sbr.rel (0) target = $region73
          $region72: #{topk_pallas.1} parent=68 // pred_region
            // Predicated region
            $region74: #{topk_pallas.1} parent=72 // pred_check
              _
            $region75: #{topk_pallas.1} parent=72 // pred_check_branch
              %385 = sbr.rel target = $region77
            $region76: #{topk_pallas.1} parent=72 // pred_region
              // Predicated region
              $region89: #{topk_pallas.1} parent=76 // pred_check
                _
              $region90: #{topk_pallas.1} parent=76 // pred_check_branch
                %403 = sbr.rel (0) target = $region92
              $region91: #{topk_pallas.1} parent=76 // pred_region
                %s405 = ssub.s32 4, 1
                loop: start=0, step=1, limit=1
                $region93: #{topk_pallas.1} parent=91 // loop_pre_header
                  _
                $region94: #{topk_pallas.1} parent=91 // loop_header
                  %s407 = sphi 0, %s411
                  %p408 = scmp.ge.s32.totalorder %s407, 1
                  %s412 = sphi %s369, %s369
                  %s413 = sphi %s381, %s381
                $region95: #{topk_pallas.1} parent=91 // loop_header_branch
                  %410 = sbr.rel (%p408) target = $region99
                $region96: #{topk_pallas.1} parent=91 // loop_body
                  %v414 = vld [vmem:[%s412] sm:%s405]
                  %415 = vst [vmem:[%s413] sm:%s405] %v414
                  %v416 = vld [vmem:[%s412 + $0x2] sm:%s405]
                  %417 = vst [vmem:[%s413 + $0x4] sm:%s405] %v416
                $region97: #{topk_pallas.1} parent=91 // loop_footer
                  %s411 = sadd.s32 1, %s407
                $region98: #{topk_pallas.1} parent=91 // loop_footer_branch
                  %406 = sbr.rel target = $region94
                $region99: #{topk_pallas.1} parent=91 // loop_exit
                  _
              $region92: #{topk_pallas.1} parent=76 // pred_fallthru
                _
            $region77: #{topk_pallas.1} parent=72 // pred_fallthru
              _
            // Predicated region
            $region78: #{topk_pallas.1} parent=72 // pred_check
              _
            $region79: #{topk_pallas.1} parent=72 // pred_check_branch
              %387 = sbr.rel (0) target = $region81
            $region80: #{topk_pallas.1} parent=72 // pred_region
              %s389 = ssub.s32 4, 1
              loop: start=0, step=1, limit=1
              $region82: #{topk_pallas.1} parent=80 // loop_pre_header
                _
              $region83: #{topk_pallas.1} parent=80 // loop_header
                %s391 = sphi 0, %s395
                %p392 = scmp.ge.s32.totalorder %s391, 1
                %s396 = sphi %s369, %s369
                %s397 = sphi %s381, %s381
              $region84: #{topk_pallas.1} parent=80 // loop_header_branch
                %394 = sbr.rel (%p392) target = $region88
              $region85: #{topk_pallas.1} parent=80 // loop_body
                %v398 = vld [vmem:[%s396] sm:%s389]
                %399 = vst [vmem:[%s397] sm:%s389] %v398
                %v400 = vld [vmem:[%s396 + $0x2] sm:%s389]
                %401 = vst [vmem:[%s397 + $0x4] sm:%s389] %v400
              $region86: #{topk_pallas.1} parent=80 // loop_footer
                %s395 = sadd.s32 1, %s391
              $region87: #{topk_pallas.1} parent=80 // loop_footer_branch
                %390 = sbr.rel target = $region83
              $region88: #{topk_pallas.1} parent=80 // loop_exit
                _
            $region81: #{topk_pallas.1} parent=72 // pred_fallthru
              _
          $region73: #{topk_pallas.1} parent=68 // pred_fallthru
            _
          %418 = vnop
        $region69: #{topk_pallas.1} parent=60 // pred_fallthru
          _
        // Predicated region
        $region100: #{topk_pallas.1} parent=60 // pred_check
          %p419 = pneg %p102
        $region101: #{topk_pallas.1} parent=60 // pred_check_branch
          %421 = sbr.rel (%p419) target = $region103
        $region102: #{topk_pallas.1} parent=60 // pred_region
          %s422 = smul.u32 2, %s18
          %s423 = smul.addr %s422, 2
          %s424 = sadd.s32 %s19, %s423
          %s425 = smul.addr %s424, 2
          %s426 = scalar_lea.vmem %s2, %s425
          // Predicated region
          $region104: #{topk_pallas.1} parent=102 // pred_check
            _
          $region105: #{topk_pallas.1} parent=102 // pred_check_branch
            %428 = sbr.rel (0) target = $region107
          $region106: #{topk_pallas.1} parent=102 // pred_region
            // Predicated region
            $region108: #{topk_pallas.1} parent=106 // pred_check
              _
            $region109: #{topk_pallas.1} parent=106 // pred_check_branch
              %430 = sbr.rel target = $region111
            $region110: #{topk_pallas.1} parent=106 // pred_region
              // Predicated region
              $region123: #{topk_pallas.1} parent=110 // pred_check
                _
              $region124: #{topk_pallas.1} parent=110 // pred_check_branch
                %448 = sbr.rel (0) target = $region126
              $region125: #{topk_pallas.1} parent=110 // pred_region
                %s450 = ssub.s32 4, 1
                loop: start=0, step=1, limit=1
                $region127: #{topk_pallas.1} parent=125 // loop_pre_header
                  _
                $region128: #{topk_pallas.1} parent=125 // loop_header
                  %s452 = sphi 0, %s456
                  %p453 = scmp.ge.s32.totalorder %s452, 1
                  %s457 = sphi %s373, %s373
                  %s458 = sphi %s426, %s426
                $region129: #{topk_pallas.1} parent=125 // loop_header_branch
                  %455 = sbr.rel (%p453) target = $region133
                $region130: #{topk_pallas.1} parent=125 // loop_body
                  %v459 = vld [vmem:[%s457] sm:%s450]
                  %460 = vst [vmem:[%s458] sm:%s450] %v459
                  %v461 = vld [vmem:[%s457 + $0x2] sm:%s450]
                  %462 = vst [vmem:[%s458 + $0x4] sm:%s450] %v461
                $region131: #{topk_pallas.1} parent=125 // loop_footer
                  %s456 = sadd.s32 1, %s452
                $region132: #{topk_pallas.1} parent=125 // loop_footer_branch
                  %451 = sbr.rel target = $region128
                $region133: #{topk_pallas.1} parent=125 // loop_exit
                  _
              $region126: #{topk_pallas.1} parent=110 // pred_fallthru
                _
            $region111: #{topk_pallas.1} parent=106 // pred_fallthru
              _
            // Predicated region
            $region112: #{topk_pallas.1} parent=106 // pred_check
              _
            $region113: #{topk_pallas.1} parent=106 // pred_check_branch
              %432 = sbr.rel (0) target = $region115
            $region114: #{topk_pallas.1} parent=106 // pred_region
              %s434 = ssub.s32 4, 1
              loop: start=0, step=1, limit=1
              $region116: #{topk_pallas.1} parent=114 // loop_pre_header
                _
              $region117: #{topk_pallas.1} parent=114 // loop_header
                %s436 = sphi 0, %s440
                %p437 = scmp.ge.s32.totalorder %s436, 1
                %s441 = sphi %s373, %s373
                %s442 = sphi %s426, %s426
              $region118: #{topk_pallas.1} parent=114 // loop_header_branch
                %439 = sbr.rel (%p437) target = $region122
              $region119: #{topk_pallas.1} parent=114 // loop_body
                %v443 = vld [vmem:[%s441] sm:%s434]
                %444 = vst [vmem:[%s442] sm:%s434] %v443
                %v445 = vld [vmem:[%s441 + $0x2] sm:%s434]
                %446 = vst [vmem:[%s442 + $0x4] sm:%s434] %v445
              $region120: #{topk_pallas.1} parent=114 // loop_footer
                %s440 = sadd.s32 1, %s436
              $region121: #{topk_pallas.1} parent=114 // loop_footer_branch
                %435 = sbr.rel target = $region117
              $region122: #{topk_pallas.1} parent=114 // loop_exit
                _
            $region115: #{topk_pallas.1} parent=106 // pred_fallthru
              _
          $region107: #{topk_pallas.1} parent=102 // pred_fallthru
            _
          %463 = vnop
        $region103: #{topk_pallas.1} parent=60 // pred_fallthru
          _
      $region61: #{topk_pallas.1} parent=5 // pred_fallthru
        _
      %p464 = scmp.le.s32.totalorder 2, %s9
      // Predicated region
      $region134: #{topk_pallas.1} parent=5 // pred_check
        %p465 = pneg %p464
      $region135: #{topk_pallas.1} parent=5 // pred_check_branch
        %467 = sbr.rel (%p465) target = $region137
      $region136: #{topk_pallas.1} parent=5 // pred_region
        %s468 = ssub.s32 %s9, 2
        // Predicated region
        $region138: #{topk_pallas.1} parent=136 // pred_check
          %p469 = pneg %p80
        $region139: #{topk_pallas.1} parent=136 // pred_check_branch
          %471 = sbr.rel (%p469) target = $region141
        $region140: #{topk_pallas.1} parent=136 // pred_region
          %s472 = sand.u32 %s65, 1
          %s473 = sand.u32 %s65, 1
          %s474 = smul.addr %s473, 4
          %s475 = scalar_lea.vmem [#allocation3], %s474
        $region141: #{topk_pallas.1} parent=136 // pred_fallthru
          _
        // Predicated region
        $region142: #{topk_pallas.1} parent=136 // pred_check
          %p476 = pneg %p108
        $region143: #{topk_pallas.1} parent=136 // pred_check_branch
          %478 = sbr.rel (%p476) target = $region145
        $region144: #{topk_pallas.1} parent=136 // pred_region
          %s479 = sand.u32 %s93, 1
          %s480 = sand.u32 %s93, 1
          %s481 = smul.addr %s480, 4
          %s482 = scalar_lea.vmem [#allocation4], %s481
        $region145: #{topk_pallas.1} parent=136 // pred_fallthru
          _
      $region137: #{topk_pallas.1} parent=5 // pred_fallthru
        _
    $region6: #{topk_pallas.1} parent=1 // loop_footer
      %s13 = sadd.s32 1, %s9
    $region7: #{topk_pallas.1} parent=1 // loop_footer_branch
      %8 = sbr.rel target = $region3
    $region8: #{topk_pallas.1} parent=1 // loop_exit
      _

</llo_original>
